<compile_context>
chip_gen: v7x
topology: tpu7x:2x2x1
jax: 0.10.0
libtpu: 0.0.40
codegen_flags: <defaults>
</compile_context>

<pallas_src>
import functools

import jax
import jax.numpy as jnp
from jax import lax
from jax.experimental import pallas as pl
from jax.experimental.pallas import tpu as pltpu

_MATMUL_DTYPE = jnp.bfloat16     # MXU operand dtype (accumulation stays f32)


def _round_up(x, m):
    return ((x + m - 1) // m) * m


def _vmem_capacity_bytes():
    """Physical VMEM capacity of the local TPU, with a conservative fallback
    (64 MiB = v7x per-TensorCore, the smallest of current generations)."""
    try:
        return int(pltpu.get_tpu_info().vmem_capacity_bytes)
    except Exception:
        return 64 * 1024 * 1024


def _choose_tm(n, d, dp, num_layers, x_itemsize, budget_bytes):
    """Largest power-of-two row tile (<= 1024) whose VMEM footprint fits the
    budget, then capped so the row grid has >= 2 steps whenever n allows
    (v7x megacore).  Accounts for double-buffered resident weights,
    sublane-padded bias, double-buffered x/out tiles and f32 temporaries."""
    wb = jnp.dtype(_MATMUL_DTYPE).itemsize
    d_rows = _round_up(d, 16)                                 # bf16 sublane pad
    # Constant-index-map inputs are still double-buffered by the pipeline.
    resident = 2 * num_layers * d_rows * (2 * dp) * wb        # weights
    resident += 2 * num_layers * 8 * (2 * dp) * wb            # bias (8-sublane pad)

    def tile_bytes(tm):
        io = 2 * tm * d * x_itemsize          # x tile, double-buffered
        io += 2 * tm * d * x_itemsize         # out tile, double-buffered
        tmp = tm * (2 * dp) * 4               # z (f32)
        tmp += 4 * tm * dp * 4                # x/o/g/blend f32 temporaries
        tmp += tm * dp * wb                   # bf16 copy of x fed to the MXU
        return io + tmp

    if resident + tile_bytes(8) > budget_bytes:
        # TODO(synk): stream weights layer-by-layer instead of erroring when
        # num_layers * dp is too large for resident weights.
        raise ValueError(
            f"Highway weights ({num_layers} layers, padded width {dp}) do not "
            f"fit the VMEM budget of {budget_bytes} bytes.")

    tm = 1024
    while tm > 8 and resident + tile_bytes(tm) > budget_bytes:
        tm //= 2
    # Keep >= 2 row tiles whenever possible so "parallel" can shard the row
    # grid across both v7x TensorCores (neutral on single-core v5e/v6e).
    while tm > 8 and tm >= n:
        tm //= 2
    return tm


def _highway_kernel(x_ref, w_ref, b_ref, out_ref, *, d, dp, num_layers):
    """x_ref/out_ref: (TM, d).  w_ref: (L, d, 2*dp) bf16.  b_ref: (L, 1, 2*dp) bf16.

    Weight/bias column layout: [0:d] -> o-half (relu), [dp:dp+d] -> g-half
    (gate).  Each half starts at a multiple-of-128 lane offset, so the o/g
    slices below are lane-aligned and free.
    """
    x = x_ref[...].astype(jnp.float32)                        # (TM, d)

    def layer(x, w, b):
        # One fused bf16 MXU pass over both halves, f32 accumulation.
        z = jnp.dot(x.astype(_MATMUL_DTYPE), w,
                    preferred_element_type=jnp.float32)
        z = z + b.astype(jnp.float32)
        o = jnp.maximum(z[:, :d], 0.0)                        # relu half
        g = jax.nn.sigmoid(z[:, dp:dp + d])                   # gate half
        return o + g * (x - o)                                # == g*x + (1-g)*o

    if num_layers <= 4:                                       # short stacks: unroll
        for l in range(num_layers):
            x = layer(x, w_ref[l], b_ref[l])
    else:                                                     # deep stacks: bounded live ranges
        x = lax.fori_loop(0, num_layers,
                          lambda l, xc: layer(xc, w_ref[l], b_ref[l]), x)

    out_ref[...] = x.astype(out_ref.dtype)


def init_highway_params(key, input_dim, num_layers=1, dtype=jnp.float32):
    """Matches Highway.__init__: W ~ N(0, 1/sqrt(D)), b[:D]=0, b[D:]=1."""
    scale = 1.0 / (input_dim ** 0.5)
    params = []
    for _ in range(num_layers):
        key, sub = jax.random.split(key)
        w = scale * jax.random.normal(sub, (2 * input_dim, input_dim), dtype=dtype)
        b = jnp.concatenate(
            [jnp.zeros((input_dim,), dtype), jnp.ones((input_dim,), dtype)])
        params.append((w, b))
    return params


@jax.jit
def highway_forward(x, params):
    """x: (..., D).  params: list of (W (2D, D), b (2D,)) as in nn.Linear."""
    d = x.shape[-1]
    lead = x.shape[:-1]
    num_layers = len(params)
    dp = max(128, _round_up(d, 128))                  # lane-aligned half-width

    x2d = x.reshape(-1, d)
    n = max(x2d.shape[0], 1)

    cap = _vmem_capacity_bytes()
    budget = int(cap * 0.65)                          # sizing budget (headroom
                                                      # for compiler scratch)
    vmem_limit = min(cap, int(cap * 0.80))
    tm = _choose_tm(n, d, dp, num_layers, x.dtype.itemsize, budget)

    # Pack all layers' weights as one VMEM-resident bf16 tensor:
    #   w_cat[l] = [ W_o^T | 0 | W_g^T | 0 ]  (d, 2*dp),  b_cat[l] likewise.
    # Only columns [0:d] and [dp:dp+d] are ever read in the kernel.
    w_cat = jnp.zeros((num_layers, d, 2 * dp), jnp.float32)
    b_cat = jnp.zeros((num_layers, 1, 2 * dp), jnp.float32)
    for l, (w, b) in enumerate(params):
        w = w.astype(jnp.float32)
        b = b.astype(jnp.float32)
        w_cat = w_cat.at[l, :, :d].set(w[:d, :].T)            # o half
        w_cat = w_cat.at[l, :, dp:dp + d].set(w[d:, :].T)     # g half
        b_cat = b_cat.at[l, 0, :d].set(b[:d])
        b_cat = b_cat.at[l, 0, dp:dp + d].set(b[d:])
    w_cat = w_cat.astype(_MATMUL_DTYPE)
    b_cat = b_cat.astype(_MATMUL_DTYPE)

    kernel = functools.partial(_highway_kernel, d=d, dp=dp, num_layers=num_layers)
    out2d = pl.pallas_call(
        kernel,
        out_shape=jax.ShapeDtypeStruct((n, d), x.dtype),
        grid_spec=pltpu.PrefetchScalarGridSpec(
            num_scalar_prefetch=0,
            grid=(pl.cdiv(n, tm),),
            in_specs=[
                pl.BlockSpec((tm, d), lambda i: (i, 0)),                      # x tile
                pl.BlockSpec((num_layers, d, 2 * dp), lambda i: (0, 0, 0)),   # weights (resident)
                pl.BlockSpec((num_layers, 1, 2 * dp), lambda i: (0, 0, 0)),   # bias (resident)
            ],
            out_specs=pl.BlockSpec((tm, d), lambda i: (i, 0)),
        ),
        compiler_params=pltpu.CompilerParams(
            dimension_semantics=("parallel",),
            vmem_limit_bytes=vmem_limit),
    )(x2d, w_cat, b_cat)

    return out2d.reshape(*lead, d)


def _reference(x, params):
    """Pure-JAX f32 reference mirroring the PyTorch forward."""
    for (w, b) in params:
        z = x @ w.T + b
        o, g = jnp.split(z, 2, axis=-1)
        o = jax.nn.relu(o)
        g = jax.nn.sigmoid(g)
        x = g * x + (1.0 - g) * o
    return x


if __name__ == "__main__":
    key = jax.random.PRNGKey(0)
    k_x, k_p = jax.random.split(key)

    batch, seq, hidden = 2, 8, 32          # input_dim = 32
    num_layers = 2
    x = jax.random.normal(k_x, (batch, seq, hidden), dtype=jnp.float32)
    params = init_highway_params(k_p, hidden, num_layers=num_layers)

    out = jax.block_until_ready(highway_forward(x, params))
    ref = _reference(x, params)

    assert out.shape == x.shape and out.dtype == x.dtype
    # Tolerance re-baselined for bf16 MXU operands (f32 accumulation) vs. the
    # pure-f32 reference, per the performance review.
    max_err = float(jnp.max(jnp.abs(out - ref)))
    assert jnp.allclose(out, ref, atol=5e-2, rtol=0.0), (
        "mismatch vs reference: max abs err = %f" % max_err)
    print("KERNEL_OK")
</pallas_src>

<mosaic_0001>
module attributes {stable_mosaic.version = 11 : i64} {
  func.func @_highway_kernel(%arg0: i32, %arg1: memref<8x32xf32, #tpu.memory_space<vmem>>, %arg2: memref<2x32x256xbf16, #tpu.memory_space<vmem>>, %arg3: memref<2x1x256xbf16, #tpu.memory_space<vmem>>, %arg4: memref<8x32xf32, #tpu.memory_space<vmem>>) attributes {dimension_semantics = [#tpu.dimension_semantics<parallel>], iteration_bounds = array<i64: 2>, scalar_prefetch = 0 : i64, scratch_operands = 0 : i64, tpu.core_type = #tpu.core_type<tc>, window_params = [{transform_indices = @transform_0, window_bounds = array<i64: 8, 32>}, {pipeline_mode = #tpu.pipeline_mode<synchronous>, transform_indices = @transform_1, window_bounds = array<i64: 2, 32, 256>}, {pipeline_mode = #tpu.pipeline_mode<synchronous>, transform_indices = @transform_2, window_bounds = array<i64: 2, 1, 256>}, {transform_indices = @transform_3, window_bounds = array<i64: 8, 32>}]} {
    %c0 = arith.constant 0 : index
    %c0_0 = arith.constant 0 : index
    %0 = vector.load %arg1[%c0, %c0_0] : memref<8x32xf32, #tpu.memory_space<vmem>>, vector<8x32xf32>
    %c0_1 = arith.constant 0 : index
    %c0_2 = arith.constant 0 : index
    %c0_3 = arith.constant 0 : index
    %1 = vector.load %arg2[%c0_1, %c0_2, %c0_3] : memref<2x32x256xbf16, #tpu.memory_space<vmem>>, vector<1x32x256xbf16>
    %2 = vector.shape_cast %1 : vector<1x32x256xbf16> to vector<32x256xbf16>
    %c0_4 = arith.constant 0 : index
    %c0_5 = arith.constant 0 : index
    %c0_6 = arith.constant 0 : index
    %3 = vector.load %arg3[%c0_4, %c0_5, %c0_6] : memref<2x1x256xbf16, #tpu.memory_space<vmem>>, vector<1x1x256xbf16>
    %4 = vector.shape_cast %3 : vector<1x1x256xbf16> to vector<1x256xbf16>
    %5 = arith.truncf %0 : vector<8x32xf32> to vector<8x32xbf16>
    %cst = arith.constant dense<0.000000e+00> : vector<8x256xf32>
    %6 = tpu.matmul %5, %2, %cst {dimension_numbers = #tpu.dot_dimension_numbers<[1], [0], [0], [1], [0, 0, 1, 1], [], []>} : vector<8x32xbf16>, vector<32x256xbf16>, vector<8x256xf32> -> vector<8x256xf32>
    %7 = arith.extf %4 : vector<1x256xbf16> to vector<1x256xf32>
    %8 = vector.broadcast %7 : vector<1x256xf32> to vector<8x256xf32>
    %9 = arith.addf %6, %8 : vector<8x256xf32>
    %10 = vector.extract_strided_slice %9 {offsets = [0, 0], sizes = [8, 32], strides = [1, 1]} : vector<8x256xf32> to vector<8x32xf32>
    %cst_7 = arith.constant 0.000000e+00 : f32
    %11 = vector.broadcast %cst_7 : f32 to vector<8x32xf32>
    %12 = arith.maximumf %10, %11 : vector<8x32xf32>
    %13 = vector.extract_strided_slice %9 {offsets = [0, 128], sizes = [8, 32], strides = [1, 1]} : vector<8x256xf32> to vector<8x32xf32>
    %14 = arith.negf %13 : vector<8x32xf32>
    %15 = math.exp %14 : vector<8x32xf32>
    %cst_8 = arith.constant 1.000000e+00 : f32
    %16 = vector.broadcast %cst_8 : f32 to vector<8x32xf32>
    %17 = arith.addf %16, %15 : vector<8x32xf32>
    %18 = arith.divf %16, %17 : vector<8x32xf32>
    %19 = arith.subf %0, %12 : vector<8x32xf32>
    %20 = arith.mulf %18, %19 : vector<8x32xf32>
    %21 = arith.addf %12, %20 : vector<8x32xf32>
    %c1 = arith.constant 1 : index
    %c0_9 = arith.constant 0 : index
    %c0_10 = arith.constant 0 : index
    %22 = vector.load %arg2[%c1, %c0_9, %c0_10] : memref<2x32x256xbf16, #tpu.memory_space<vmem>>, vector<1x32x256xbf16>
    %23 = vector.shape_cast %22 : vector<1x32x256xbf16> to vector<32x256xbf16>
    %c1_11 = arith.constant 1 : index
    %c0_12 = arith.constant 0 : index
    %c0_13 = arith.constant 0 : index
    %24 = vector.load %arg3[%c1_11, %c0_12, %c0_13] : memref<2x1x256xbf16, #tpu.memory_space<vmem>>, vector<1x1x256xbf16>
    %25 = vector.shape_cast %24 : vector<1x1x256xbf16> to vector<1x256xbf16>
    %26 = arith.truncf %21 : vector<8x32xf32> to vector<8x32xbf16>
    %cst_14 = arith.constant dense<0.000000e+00> : vector<8x256xf32>
    %27 = tpu.matmul %26, %23, %cst_14 {dimension_numbers = #tpu.dot_dimension_numbers<[1], [0], [0], [1], [0, 0, 1, 1], [], []>} : vector<8x32xbf16>, vector<32x256xbf16>, vector<8x256xf32> -> vector<8x256xf32>
    %28 = arith.extf %25 : vector<1x256xbf16> to vector<1x256xf32>
    %29 = vector.broadcast %28 : vector<1x256xf32> to vector<8x256xf32>
    %30 = arith.addf %27, %29 : vector<8x256xf32>
    %31 = vector.extract_strided_slice %30 {offsets = [0, 0], sizes = [8, 32], strides = [1, 1]} : vector<8x256xf32> to vector<8x32xf32>
    %cst_15 = arith.constant 0.000000e+00 : f32
    %32 = vector.broadcast %cst_15 : f32 to vector<8x32xf32>
    %33 = arith.maximumf %31, %32 : vector<8x32xf32>
    %34 = vector.extract_strided_slice %30 {offsets = [0, 128], sizes = [8, 32], strides = [1, 1]} : vector<8x256xf32> to vector<8x32xf32>
    %35 = arith.negf %34 : vector<8x32xf32>
    %36 = math.exp %35 : vector<8x32xf32>
    %cst_16 = arith.constant 1.000000e+00 : f32
    %37 = vector.broadcast %cst_16 : f32 to vector<8x32xf32>
    %38 = arith.addf %37, %36 : vector<8x32xf32>
    %39 = arith.divf %37, %38 : vector<8x32xf32>
    %40 = arith.subf %21, %33 : vector<8x32xf32>
    %41 = arith.mulf %39, %40 : vector<8x32xf32>
    %42 = arith.addf %33, %41 : vector<8x32xf32>
    %c0_17 = arith.constant 0 : index
    %c0_18 = arith.constant 0 : index
    %43 = vector.load %arg4[%c0_17, %c0_18] : memref<8x32xf32, #tpu.memory_space<vmem>>, vector<8x32xf32>
    tpu.vector_store %arg4[%c0_17, %c0_18], %42 {strides = array<i32>} : memref<8x32xf32, #tpu.memory_space<vmem>>, vector<8x32xf32>,
    return
  }
  func.func @transform_0(%arg0: i32) -> (i32, i32) {
    %c0_i32 = arith.constant 0 : i32
    %c0_i32_0 = arith.constant 0 : i32
    return %arg0, %c0_i32 : i32, i32
  }
  func.func @transform_1(%arg0: i32) -> (i32, i32, i32) {
    %c0_i32 = arith.constant 0 : i32
    %c0_i32_0 = arith.constant 0 : i32
    %c0_i32_1 = arith.constant 0 : i32
    %c0_i32_2 = arith.constant 0 : i32
    return %c0_i32, %c0_i32_0, %c0_i32_1 : i32, i32, i32
  }
  func.func @transform_2(%arg0: i32) -> (i32, i32, i32) {
    %c0_i32 = arith.constant 0 : i32
    %c0_i32_0 = arith.constant 0 : i32
    %c0_i32_1 = arith.constant 0 : i32
    %c0_i32_2 = arith.constant 0 : i32
    return %c0_i32, %c0_i32_0, %c0_i32_1 : i32, i32, i32
  }
  func.func @transform_3(%arg0: i32) -> (i32, i32) {
    %c0_i32 = arith.constant 0 : i32
    %c0_i32_0 = arith.constant 0 : i32
    return %arg0, %c0_i32 : i32, i32
  }
}

</mosaic_0001>

<llo_original>
// kernel: highway_forward.1
$region0: #{highway_forward.1}
  #allocation0 [shape = 'u32[]', space=smem, size = 0x4, offset = 0x4, fixed_abs, tag = 'smem constant byte address 0x4 - core index']
  #allocation1 [shape = 'u32[144,128]{1,0:T(1,128)}', space=vmem, size = 0x12000, scoped, tag = 'internal scratch']
  %s0 = inlined_call_operand.vmem [shape: f32[16,32], index: 0, kind: input, shape index: {}]
  %s1 = inlined_call_operand.vmem [shape: bf16[2,32,256], index: 1, kind: input, shape index: {}]
  %s2 = inlined_call_operand.vmem [shape: bf16[2,1,256], index: 2, kind: input, shape index: {}]
  %s3 = inlined_call_operand.hbm [shape: f32[16,32], index: 3, kind: output, shape index: {}]
  %s4 = sld [smem:[#allocation0]]
  $region45: #{highway_forward.1} parent=0
    _
  %s6 = ssub.s32 1, %s4
  %s7 = scalar_select 0, %s6, %s4
  $region1: #{highway_forward.1} parent=0
    #allocation2 [shape = 'u8[8192]{0}', space=vmem, size = 0x2000, scoped, tag = 'output window, operand 0']
    #allocation3 [shape = 's32[2]{0}', space=sflag, size = 0x8, scoped, tag = 'scoped memory for highway_forward.1']
    %8 = vsyncpa [#allocation3], 0
    %s9 = scalar_lea.sflag [#allocation3], 1
    %10 = vsyncpa %s9, 0
    loop: start=0, step=1, limit=4
    $region2: #{highway_forward.1} parent=1 // loop_pre_header
      _
    $region3: #{highway_forward.1} parent=1 // loop_header
      %s12 = sphi 0, %s16
      %p13 = scmp.ge.s32.totalorder %s12, 4
      %s22 = sphi 0, %s24
      %s25 = sphi 0, %s22
      %s26 = sphi 0, %s25
      %s42 = sphi 0, %s26
      %s46 = sphi 0, %s46
      %s48 = sphi 0, %s46
      %s49 = sphi 0, %s48
      %s63 = sphi 0, %s49
      %s67 = sphi 0, %s67
      %s69 = sphi 0, %s67
      %s70 = sphi 0, %s69
      %s84 = sphi 0, %s70
      %s90 = sphi 0, %s92
      %s93 = sphi 0, %s90
      %s94 = sphi 0, %s93
      %s110 = sphi 0, %s94
    $region4: #{highway_forward.1} parent=1 // loop_header_branch
      %15 = sbr.rel (%p13) target = $region8
    $region5: #{highway_forward.1} parent=1 // loop_body
      %s17 = ssub.s32 %s12, 1
      %s18 = ssub.s32 %s12, 2
      %s19 = sadd.s32 %s12, 1
      %s20 = ssub.s32 %s12, %s19
      %p21 = scmp.eq.s32.totalorder %s20, 0
      %s23 = sadd.s32 %s22, 1
      %s24 = scalar_select %p21, %s22, %s23
      %p27 = pneg %p21
      %p28 = scmp.eq.s32.totalorder %s12, 1
      %p29 = por %p27, %p28
      %p30 = scmp.ne.s32.totalorder %s22, %s25
      %p31 = scmp.eq.s32.totalorder %s12, 0
      %p32 = por %p30, %p31
      %p33 = scmp.ne.s32.totalorder %s22, %s25
      %p34 = scmp.eq.s32.totalorder %s17, 1
      %p35 = por %p33, %p34
      %p36 = scmp.ne.s32.totalorder %s25, %s26
      %p37 = scmp.eq.s32.totalorder %s17, 0
      %p38 = por %p36, %p37
      %p39 = scmp.ne.s32.totalorder %s25, %s26
      %p40 = scmp.eq.s32.totalorder %s18, 1
      %p41 = por %p39, %p40
      %p43 = scmp.ne.s32.totalorder %s26, %s42
      %p44 = scmp.eq.s32.totalorder %s18, 0
      %p45 = por %p43, %p44
      %s47 = sadd.s32 %s46, 1
      %p50 = scmp.eq.s32.totalorder %s12, 1
      %p51 = scmp.ne.s32.totalorder %s46, %s48
      %p52 = scmp.eq.s32.totalorder %s12, 0
      %p53 = por %p51, %p52
      %p54 = scmp.ne.s32.totalorder %s46, %s48
      %p55 = scmp.eq.s32.totalorder %s17, 1
      %p56 = por %p54, %p55
      %p57 = scmp.ne.s32.totalorder %s48, %s49
      %p58 = scmp.eq.s32.totalorder %s17, 0
      %p59 = por %p57, %p58
      %p60 = scmp.ne.s32.totalorder %s48, %s49
      %p61 = scmp.eq.s32.totalorder %s18, 1
      %p62 = por %p60, %p61
      %p64 = scmp.ne.s32.totalorder %s49, %s63
      %p65 = scmp.eq.s32.totalorder %s18, 0
      %p66 = por %p64, %p65
      %s68 = sadd.s32 %s67, 1
      %p71 = scmp.eq.s32.totalorder %s12, 1
      %p72 = scmp.ne.s32.totalorder %s67, %s69
      %p73 = scmp.eq.s32.totalorder %s12, 0
      %p74 = por %p72, %p73
      %p75 = scmp.ne.s32.totalorder %s67, %s69
      %p76 = scmp.eq.s32.totalorder %s17, 1
      %p77 = por %p75, %p76
      %p78 = scmp.ne.s32.totalorder %s69, %s70
      %p79 = scmp.eq.s32.totalorder %s17, 0
      %p80 = por %p78, %p79
      %p81 = scmp.ne.s32.totalorder %s69, %s70
      %p82 = scmp.eq.s32.totalorder %s18, 1
      %p83 = por %p81, %p82
      %p85 = scmp.ne.s32.totalorder %s70, %s84
      %p86 = scmp.eq.s32.totalorder %s18, 0
      %p87 = por %p85, %p86
      %s88 = ssub.s32 %s12, %s19
      %p89 = scmp.eq.s32.totalorder %s88, 0
      %s91 = sadd.s32 %s90, 1
      %s92 = scalar_select %p89, %s90, %s91
      %p95 = pneg %p89
      %p96 = scmp.eq.s32.totalorder %s12, 1
      %p97 = por %p95, %p96
      %p98 = scmp.ne.s32.totalorder %s90, %s93
      %p99 = scmp.eq.s32.totalorder %s12, 0
      %p100 = por %p98, %p99
      %p101 = scmp.ne.s32.totalorder %s90, %s93
      %p102 = scmp.eq.s32.totalorder %s17, 1
      %p103 = por %p101, %p102
      %p104 = scmp.ne.s32.totalorder %s93, %s94
      %p105 = scmp.eq.s32.totalorder %s17, 0
      %p106 = por %p104, %p105
      %p107 = scmp.ne.s32.totalorder %s93, %s94
      %p108 = scmp.eq.s32.totalorder %s18, 1
      %p109 = por %p107, %p108
      %p111 = scmp.ne.s32.totalorder %s94, %s110
      %p112 = scmp.eq.s32.totalorder %s18, 0
      %p113 = por %p111, %p112
      %p114 = scmp.le.s32.totalorder 1, %s12
      %p115 = scmp.lt.s32.totalorder %s12, 3
      %p116 = pnand %p114, %p115
      %p117 = pneg %p116
      // Predicated region
      $region9: #{highway_forward.1} parent=5 // pred_check
        _
      $region10: #{highway_forward.1} parent=5 // pred_check_branch
        %119 = sbr.rel (%p116) target = $region12
      $region11: #{highway_forward.1} parent=5 // pred_region
        %s120 = ssub.s32 %s12, 1
        // Predicated region
        $region13: #{highway_forward.1} parent=11 // pred_check
          %p121 = pneg %p59
        $region14: #{highway_forward.1} parent=11 // pred_check_branch
          %123 = sbr.rel (%p121) target = $region16
        $region15: #{highway_forward.1} parent=11 // pred_region
          _
        $region16: #{highway_forward.1} parent=11 // pred_fallthru
          _
        // Predicated region
        $region17: #{highway_forward.1} parent=11 // pred_check
          %p124 = pneg %p80
        $region18: #{highway_forward.1} parent=11 // pred_check_branch
          %126 = sbr.rel (%p124) target = $region20
        $region19: #{highway_forward.1} parent=11 // pred_region
          _
        $region20: #{highway_forward.1} parent=11 // pred_fallthru
          _
      $region12: #{highway_forward.1} parent=5 // pred_fallthru
        _
      %p127 = scmp.lt.s32.totalorder %s12, 2
      // Predicated region
      $region21: #{highway_forward.1} parent=5 // pred_check
        %p128 = pneg %p127
      $region22: #{highway_forward.1} parent=5 // pred_check_branch
        %130 = sbr.rel (%p128) target = $region24
      $region23: #{highway_forward.1} parent=5 // pred_region
        // Predicated region
        $region25: #{highway_forward.1} parent=23 // pred_check
          %p131 = pneg %p32
        $region26: #{highway_forward.1} parent=23 // pred_check_branch
          %133 = sbr.rel (%p131) target = $region28
        $region27: #{highway_forward.1} parent=23 // pred_region
          %p134 = scmp.lt.s32.totalorder %s12, 1
          %s135 = scalar_select %p134, %s12, 1
          %s136 = smul.addr %s135, 8
          %s137 = scalar_lea.vmem %s0, %s136
        $region28: #{highway_forward.1} parent=23 // pred_fallthru
          _
      $region24: #{highway_forward.1} parent=5 // pred_fallthru
        _
      %p138 = scmp.le.s32.totalorder 1, %s12
      %p139 = scmp.lt.s32.totalorder %s12, 3
      %p140 = pnand %p138, %p139
      %p141 = pneg %p140
      // Predicated region
      $region29: #{highway_forward.1} parent=5 // pred_check
        _
      $region30: #{highway_forward.1} parent=5 // pred_check_branch
        %143 = sbr.rel (%p140) target = $region32
      $region31: #{highway_forward.1} parent=5 // pred_region
        %s144 = ssub.s32 %s12, 1
        %p145 = scmp.lt.s32.totalorder %s17, 1
        %s146 = scalar_select %p145, %s17, 1
        %s147 = smul.addr %s146, 8
        %s148 = scalar_lea.vmem %s0, %s147
        %p149 = pneg %p38
        %p150 = pneg %p35
        %p151 = pneg %p59
        %p152 = pneg %p56
        %p153 = pneg %p80
        %p154 = pneg %p77
        %p155 = pneg %p106
        %p156 = pneg %p103
        %s157 = sand.u32 %s93, 1
        %s158 = scalar_lea.sflag [#allocation3], %s157
        %s159 = sand.u32 %s93, 1
        %s160 = smul.addr %s159, 8
        %s161 = scalar_lea.vmem [#allocation2], %s160
        %p162 = scmp.lt.s32.totalorder %s17, 1
        %s163 = scalar_select %p162, %s17, 1
        %s164 = smul.addr %s163, 8
        %s165 = scalar_lea.vmem %s0, %s164
        %v167 = vld [vmem:[%s165] sm:$0xff]
        %v168 = vld [vmem:[%s1] sm:$0xff]
        %v169 = vld [vmem:[%s1 + $0x8] sm:$0xff]
        %v170 = vld [vmem:[%s1 + $0x10] sm:$0xff]
        %v171 = vld [vmem:[%s1 + $0x18] sm:$0xff]
        %v172 = vld [vmem:[%s2] sm:$0x3]
        %v173 = vpack.c.bf16 %v167, %v167
        %v174 = vunpack.c.l.bf16 %v172
        %v176 = vlaneseq
        %v177 = vshrl.u32 %v176, 7
        %v178 = vsub.s32 0, %v177
        %v179 = vrot.slane %v174, %v178
        %v180 = vlaneseq
        %v181 = vshrl.u32 %v180, 7
        %v182 = vsub.s32 2, %v181
        %v183 = vrot.slane %v174, %v182
        %v186 = vlaneseq
        %v187 = vshrl.u32 %v186, 7
        %v188 = vsub.s32 0, %v187
        %v189 = vrot.slane %v179, %v188
        %v190 = vlaneseq
        %v191 = vshrl.u32 %v190, 7
        %v192 = vsub.s32 0, %v191
        %v193 = vrot.slane %v183, %v192
        %v198 = vunpack.c.l.b16 %v168
        %v199 = vunpack.c.h.b16 %v168
        %v200 = vunpack.c.l.b16 %v169
        %v201 = vunpack.c.h.b16 %v169
        %v202 = vunpack.c.l.b16 %v170
        %v203 = vunpack.c.h.b16 %v170
        %v204 = vunpack.c.l.b16 %v171
        %v205 = vunpack.c.h.b16 %v171
        %v206 = vpack.c.b16 %v200, %v198
        %v207 = vpack.c.b16 %v201, %v199
        %v208 = vpack.c.b16 %v204, %v202
        %v209 = vpack.c.b16 %v205, %v203
        %vm214 = vcmask 261120
        %v216 = vsel %vm214, %v173, 0
        %218 = vmatprep.subr.bf16.mxu0 %v207
        %219 = vmatpush1.bf16.msra.mxu0 %v206
        %220 = vmatprep.subr.bf16.mxu0 %v209
        %221 = vmatpush1.bf16.msra.mxu0 %v208
        %222 = vmatprep.subr.bf16.mxu0 0
        %223 = vmatpush1.bf16.msra.mxu0 0
        %224 = vmatprep.subr.bf16.mxu0 0
        %225 = vmatpush1.bf16.msra.mxu0 0
        %226 = vmatprep.subr.bf16.mxu0 0
        %227 = vmatpush1.bf16.msra.mxu0 0
        %228 = vmatprep.subr.bf16.mxu0 0
        %229 = vmatpush1.bf16.msra.mxu0 0
        %230 = vmatprep.subr.bf16.mxu0 0
        %231 = vmatpush1.bf16.msra.mxu0 0
        %232 = vmatprep.subr.bf16.mxu0 0
        %233 = vmatpush1.bf16.msra.mxu0 0
        %234 = vmatprep.subr.bf16.mxu0 0
        %235 = vmatpush1.bf16.msra.mxu0 0
        %236 = vmatprep.subr.bf16.mxu0 0
        %237 = vmatpush1.bf16.msra.mxu0 0
        %238 = vmatprep.subr.bf16.mxu0 0
        %239 = vmatpush1.bf16.msra.mxu0 0
        %240 = vmatprep.subr.bf16.mxu0 0
        %241 = vmatpush1.bf16.msra.mxu0 0
        %242 = vmatprep.subr.bf16.mxu0 0
        %243 = vmatpush1.bf16.msra.mxu0 0
        %244 = vmatprep.subr.bf16.mxu0 0
        %245 = vmatpush1.bf16.msra.mxu0 0
        %246 = vmatprep.subr.bf16.mxu0 0
        %247 = vmatpush1.bf16.msra.mxu0 0
        %248 = vmatprep.subr.bf16.mxu0 0
        %249 = vmatpush1.bf16.msra.mxu0 0
        %250 = vmatprep.mubr.bf16.mxu0 0
        %251 = vmatmul.mubr.bf16.gmra.mrb[0].mxu0 %v216
        %v252 = vpop.f32.mrb[0].mxu0
        %v253 = vadd.f32 %v189, %v252
        %v254 = vpop.f32.mrb[0].mxu0
        %v255 = vadd.f32 %v193, %v254
        %v256 = vpop.f32.mrb[0].mxu0
        %v257 = vpop.f32.mrb[0].mxu0
        %258 = vdwg.mxu0
        %v259 = vmax.f32 %v253, 0.0
        %v260 = vxor.u32 %v255, 2147483648
        %v261 = vmul.f32 %v260, 1.442695
        %v262 = vpow.pop %v261
        %v263 = vadd.f32 %v262, 1.0
        %v264 = vrcp.pop %v263
        %v265 = vmul.f32 1.0, %v264
        %v266 = vsub.f32 %v167, %v259
        %v267 = vmul.f32 %v265, %v266
        %v268 = vadd.f32 %v259, %v267
        %s269 = scalar_lea.vmem %s1, 32
        %v270 = vld [vmem:[%s269] sm:$0xff]
        %v271 = vld [vmem:[%s269 + $0x8] sm:$0xff]
        %v272 = vld [vmem:[%s269 + $0x10] sm:$0xff]
        %v273 = vld [vmem:[%s269 + $0x18] sm:$0xff]
        %s274 = scalar_lea.vmem %s2, 2
        %v275 = vld [vmem:[%s274] sm:$0x3]
        %v276 = vpack.c.bf16 %v268, %v268
        %v277 = vunpack.c.l.bf16 %v275
        %v279 = vlaneseq
        %v280 = vshrl.u32 %v279, 7
        %v281 = vsub.s32 0, %v280
        %v282 = vrot.slane %v277, %v281
        %v283 = vlaneseq
        %v284 = vshrl.u32 %v283, 7
        %v285 = vsub.s32 2, %v284
        %v286 = vrot.slane %v277, %v285
        %v289 = vlaneseq
        %v290 = vshrl.u32 %v289, 7
        %v291 = vsub.s32 0, %v290
        %v292 = vrot.slane %v282, %v291
        %v293 = vlaneseq
        %v294 = vshrl.u32 %v293, 7
        %v295 = vsub.s32 0, %v294
        %v296 = vrot.slane %v286, %v295
        %v301 = vunpack.c.l.b16 %v270
        %v302 = vunpack.c.h.b16 %v270
        %v303 = vunpack.c.l.b16 %v271
        %v304 = vunpack.c.h.b16 %v271
        %v305 = vunpack.c.l.b16 %v272
        %v306 = vunpack.c.h.b16 %v272
        %v307 = vunpack.c.l.b16 %v273
        %v308 = vunpack.c.h.b16 %v273
        %v309 = vpack.c.b16 %v303, %v301
        %v310 = vpack.c.b16 %v304, %v302
        %v311 = vpack.c.b16 %v307, %v305
        %v312 = vpack.c.b16 %v308, %v306
        %v318 = vsel %vm214, %v276, 0
        %320 = vmatprep.subr.bf16.mxu0 %v310
        %321 = vmatpush1.bf16.msra.mxu0 %v309
        %322 = vmatprep.subr.bf16.mxu0 %v312
        %323 = vmatpush1.bf16.msra.mxu0 %v311
        %324 = vmatprep.subr.bf16.mxu0 0
        %325 = vmatpush1.bf16.msra.mxu0 0
        %326 = vmatprep.subr.bf16.mxu0 0
        %327 = vmatpush1.bf16.msra.mxu0 0
        %328 = vmatprep.subr.bf16.mxu0 0
        %329 = vmatpush1.bf16.msra.mxu0 0
        %330 = vmatprep.subr.bf16.mxu0 0
        %331 = vmatpush1.bf16.msra.mxu0 0
        %332 = vmatprep.subr.bf16.mxu0 0
        %333 = vmatpush1.bf16.msra.mxu0 0
        %334 = vmatprep.subr.bf16.mxu0 0
        %335 = vmatpush1.bf16.msra.mxu0 0
        %336 = vmatprep.subr.bf16.mxu0 0
        %337 = vmatpush1.bf16.msra.mxu0 0
        %338 = vmatprep.subr.bf16.mxu0 0
        %339 = vmatpush1.bf16.msra.mxu0 0
        %340 = vmatprep.subr.bf16.mxu0 0
        %341 = vmatpush1.bf16.msra.mxu0 0
        %342 = vmatprep.subr.bf16.mxu0 0
        %343 = vmatpush1.bf16.msra.mxu0 0
        %344 = vmatprep.subr.bf16.mxu0 0
        %345 = vmatpush1.bf16.msra.mxu0 0
        %346 = vmatprep.subr.bf16.mxu0 0
        %347 = vmatpush1.bf16.msra.mxu0 0
        %348 = vmatprep.subr.bf16.mxu0 0
        %349 = vmatpush1.bf16.msra.mxu0 0
        %350 = vmatprep.subr.bf16.mxu0 0
        %351 = vmatpush1.bf16.msra.mxu0 0
        %352 = vmatprep.mubr.bf16.mxu0 0
        %353 = vmatmul.mubr.bf16.gmra.mrb[0].mxu0 %v318
        %v354 = vpop.f32.mrb[0].mxu0
        %v355 = vadd.f32 %v292, %v354
        %v356 = vpop.f32.mrb[0].mxu0
        %v357 = vadd.f32 %v296, %v356
        %v358 = vpop.f32.mrb[0].mxu0
        %v359 = vpop.f32.mrb[0].mxu0
        %360 = vdwg.mxu0
        %v361 = vmax.f32 %v355, 0.0
        %v362 = vxor.u32 %v357, 2147483648
        %v363 = vmul.f32 %v362, 1.442695
        %v364 = vpow.pop %v363
        %v365 = vadd.f32 %v364, 1.0
        %v366 = vrcp.pop %v365
        %v367 = vmul.f32 1.0, %v366
        %v368 = vsub.f32 %v268, %v361
        %v369 = vmul.f32 %v367, %v368
        %v370 = vadd.f32 %v361, %v369
        %371 = vst.msk [vmem:[%s161] sm:$0xff] %vm214, %v370
        %s372 = sand.u32 %s93, 1
        %s373 = scalar_lea.sflag [#allocation3], %s372
        %s374 = sand.u32 %s93, 1
        %s375 = smul.addr %s374, 8
        %s376 = scalar_lea.vmem [#allocation2], %s375
        // Predicated region
        $region33: #{highway_forward.1} parent=31 // pred_check
          %p377 = pneg %p103
        $region34: #{highway_forward.1} parent=31 // pred_check_branch
          %379 = sbr.rel (%p377) target = $region36
        $region35: #{highway_forward.1} parent=31 // pred_region
          %s381 = ssub.s32 128, 128
          %382 = vsyncadd %s373, %s381
          %s383 = smul.addr %s17, 128
          %s384 = scalar_lea.hbm %s3, %s383
          %s386 = sshll.u32 %s376, 4
          %s387 = int_to_ptr.vmem [resolvable:$true] %s386
          %389 = dma.vmem_to_hbm [thread:$0]  %s387, 128, %s384, %s373
        $region36: #{highway_forward.1} parent=31 // pred_fallthru
          _
      $region32: #{highway_forward.1} parent=5 // pred_fallthru
        _
      %p390 = scmp.le.s32.totalorder 2, %s12
      // Predicated region
      $region37: #{highway_forward.1} parent=5 // pred_check
        %p391 = pneg %p390
      $region38: #{highway_forward.1} parent=5 // pred_check_branch
        %393 = sbr.rel (%p391) target = $region40
      $region39: #{highway_forward.1} parent=5 // pred_region
        %s394 = ssub.s32 %s12, 2
        // Predicated region
        $region41: #{highway_forward.1} parent=39 // pred_check
          %p395 = pneg %p109
        $region42: #{highway_forward.1} parent=39 // pred_check_branch
          %397 = sbr.rel (%p395) target = $region44
        $region43: #{highway_forward.1} parent=39 // pred_region
          %s398 = sand.u32 %s94, 1
          %s399 = scalar_lea.sflag [#allocation3], %s398
          %s400 = sand.u32 %s94, 1
          %s401 = smul.addr %s400, 8
          %s402 = scalar_lea.vmem [#allocation2], %s401
          %403 = dma.done %s399, 128
        $region44: #{highway_forward.1} parent=39 // pred_fallthru
          _
      $region40: #{highway_forward.1} parent=5 // pred_fallthru
        _
    $region6: #{highway_forward.1} parent=1 // loop_footer
      %s16 = sadd.s32 1, %s12
    $region7: #{highway_forward.1} parent=1 // loop_footer_branch
      %11 = sbr.rel target = $region3
    $region8: #{highway_forward.1} parent=1 // loop_exit
      _
    %404 = vsyncpa [#allocation3], 1
    %s405 = scalar_lea.sflag [#allocation3], 1
    %406 = vsyncpa %s405, 1

</llo_original>
